<compile_context>
chip_gen: v5e
topology: v5e:2x2
jax: 0.10.0
libtpu: 0.0.40
codegen_flags: <defaults>
</compile_context>

<pallas_src>
import jax
import jax.numpy as jnp
from jax.experimental import pallas as pl
from jax.experimental.pallas import tpu as pltpu

LANE = 128


def _round_up(x, m):
    return ((x + m - 1) // m) * m


def make_fused_gnn_kernel(num_layers, emit_all):
    """Fused multi-layer GraphConv kernel; whole graph resident in VMEM.

    Ref order: a, x, w_stack, b_stack, then outputs (all layers if emit_all,
    else just the final layer). Per layer:
        H = relu( (A @ H_prev) @ W_l + b_l )
    with bf16 MXU operands and f32 accumulation; H stays on-chip between
    layers.
    """

    def kernel(a_ref, x_ref, w_ref, b_ref, *out_refs):
        a = a_ref[...]          # (N, N)  bf16 normalized adjacency
        h = x_ref[...]          # (N, P)  bf16 lane-padded node features
        for l in range(num_layers):
            # Aggregate first: A @ H (cheaper contraction), f32 accumulate.
            ah = jnp.dot(a, h, preferred_element_type=jnp.float32)
            # Feature transform: (A H) @ W_l, lane-dense (N, P), f32 accumulate.
            hw = jnp.dot(ah.astype(jnp.bfloat16), w_ref[l],
                         preferred_element_type=jnp.float32)
            # Bias + ReLU in f32 on the VPU, then back to bf16.
            h = jnp.maximum(hw + b_ref[l], 0.0).astype(jnp.bfloat16)
            if emit_all:
                out_refs[l][...] = h
            elif l == num_layers - 1:
                out_refs[0][...] = h

    return kernel


def gnn_forward(a_hat, features, params, calc_mad=False):
    """GNN.forward(g, features): fused GraphConv stack in one pallas_call.

    Returns (x, outputs) like the module (outputs populated only when
    calc_mad=True; otherwise intermediate activations never leave VMEM).
    """
    n, fin = features.shape
    num_layers = len(params)
    h_size = params[0][0].shape[1]
    # TODO(synk): h_size/fin > 128 would need a multi-slab padded layout.
    p = max(LANE, _round_up(max(fin, h_size), LANE))

    # bf16 inputs for DMA/MXU; accumulation stays f32 inside the kernel.
    a_bf = a_hat.astype(jnp.bfloat16)

    # Lane-pad the feature dim to p so every operand is lane-dense.
    x_pad = jnp.zeros((n, p), jnp.bfloat16)
    x_pad = x_pad.at[:, :fin].set(features.astype(jnp.bfloat16))

    # Stack all layers' weights/biases into single refs (zero-padded; padded
    # rows multiply zero-padded input columns, padded output cols stay 0).
    w_stack = jnp.zeros((num_layers, p, p), jnp.bfloat16)
    b_stack = jnp.zeros((num_layers, 1, p), jnp.float32)
    for l, (w, b) in enumerate(params):
        w_stack = w_stack.at[l, : w.shape[0], : w.shape[1]].set(
            w.astype(jnp.bfloat16))
        b_stack = b_stack.at[l, 0, : b.shape[0]].set(b.astype(jnp.float32))

    n_out = num_layers if calc_mad else 1

    def vmem_spec():
        return pl.BlockSpec(memory_space=pltpu.MemorySpace.VMEM)

    out_shape = tuple(
        jax.ShapeDtypeStruct((n, p), jnp.bfloat16) for _ in range(n_out)
    )

    outs = pl.pallas_call(
        make_fused_gnn_kernel(num_layers, emit_all=calc_mad),
        out_shape=out_shape,
        in_specs=[vmem_spec(), vmem_spec(), vmem_spec(), vmem_spec()],
        out_specs=tuple(vmem_spec() for _ in range(n_out)),
    )(a_bf, x_pad, w_stack, b_stack)

    # Slice lane-padded bf16 outputs back to the true hidden size, upcast.
    layer_outs = [o[:, :h_size].astype(jnp.float32) for o in outs]
    x_out = layer_outs[-1]
    return x_out, (layer_outs if calc_mad else [])


def make_normalized_adjacency(key, n):
    """Random symmetric graph with self-loops, D^{-1/2} A D^{-1/2} normalized."""
    p = 0.1
    raw = jax.random.uniform(key, (n, n))
    adj = (raw < p).astype(jnp.float32)
    adj = jnp.maximum(adj, adj.T)                        # symmetrize
    adj = adj.at[jnp.arange(n), jnp.arange(n)].set(1.0)  # self-loops
    deg = adj.sum(axis=1)
    d_inv_sqrt = 1.0 / jnp.sqrt(deg)
    return adj * d_inv_sqrt[:, None] * d_inv_sqrt[None, :]


def init_params(key, fea_size, h_size, layers):
    params = []
    for i in range(layers):
        indim = fea_size if i == 0 else h_size
        odim = h_size
        key, kw = jax.random.split(key)
        scale = jnp.sqrt(6.0 / (indim + odim))  # glorot uniform (DGL default)
        w = jax.random.uniform(kw, (indim, odim), jnp.float32, -scale, scale)
        b = jnp.zeros((odim,), jnp.float32)
        params.append((w, b))
    return params


if __name__ == "__main__":
    # Small deterministic problem: N=128 nodes, fea_size=16, h_size=32, 2 layers.
    N, FEA_SIZE, H_SIZE, LAYERS = 128, 16, 32, 2

    key = jax.random.PRNGKey(0)
    k_adj, k_feat, k_param = jax.random.split(key, 3)

    a_hat = make_normalized_adjacency(k_adj, N)
    features = jax.random.normal(k_feat, (N, FEA_SIZE), jnp.float32)
    params = init_params(k_param, FEA_SIZE, H_SIZE, LAYERS)

    # calc_mad=True: every layer's activation is emitted (for MAD calc).
    x_mad, layer_outputs = gnn_forward(a_hat, features, params, calc_mad=True)
    # calc_mad=False: only the final activation leaves VMEM.
    x_out, no_outputs = gnn_forward(a_hat, features, params, calc_mad=False)
    jax.block_until_ready((x_mad, x_out))

    # Pure-f32 JAX reference of the same math (kernel uses bf16 operands with
    # f32 accumulation and bf16 outputs, so allow a modest tolerance).
    ref = features
    refs = []
    for (w, b) in params:
        ref = jnp.maximum(a_hat @ (ref @ w) + b[None, :], 0.0)
        refs.append(ref)

    assert x_out.shape == (N, H_SIZE)
    assert len(layer_outputs) == LAYERS
    assert len(no_outputs) == 0
    for got, want in zip(layer_outputs, refs):
        assert jnp.allclose(got, want, atol=5e-2, rtol=5e-2), (
            f"layer mismatch, max abs diff = {float(jnp.max(jnp.abs(got - want)))}"
        )
    max_diff = float(jnp.max(jnp.abs(x_out - ref)))
    assert jnp.allclose(x_out, ref, atol=5e-2, rtol=5e-2), (
        f"mismatch vs reference, max abs diff = {max_diff}"
    )
    assert jnp.allclose(x_out, x_mad, atol=1e-6)

    print("KERNEL_OK")
</pallas_src>

<mosaic_0001>
module attributes {stable_mosaic.version = 11 : i64} {
  func.func @kernel(%arg0: memref<128x128xbf16, #tpu.memory_space<vmem>>, %arg1: memref<128x128xbf16, #tpu.memory_space<vmem>>, %arg2: memref<2x128x128xbf16, #tpu.memory_space<vmem>>, %arg3: memref<2x1x128xf32, #tpu.memory_space<vmem>>, %arg4: memref<128x128xbf16, #tpu.memory_space<vmem>>, %arg5: memref<128x128xbf16, #tpu.memory_space<vmem>>) attributes {dimension_semantics = [], scalar_prefetch = 0 : i64, scratch_operands = 0 : i64, tpu.core_type = #tpu.core_type<tc>} {
    %c0 = arith.constant 0 : index
    %c0_0 = arith.constant 0 : index
    %0 = vector.load %arg0[%c0, %c0_0] : memref<128x128xbf16, #tpu.memory_space<vmem>>, vector<128x128xbf16>
    %c0_1 = arith.constant 0 : index
    %c0_2 = arith.constant 0 : index
    %1 = vector.load %arg1[%c0_1, %c0_2] : memref<128x128xbf16, #tpu.memory_space<vmem>>, vector<128x128xbf16>
    %cst = arith.constant dense<0.000000e+00> : vector<128x128xf32>
    %2 = tpu.matmul %0, %1, %cst {dimension_numbers = #tpu.dot_dimension_numbers<[1], [0], [0], [1], [0, 0, 1, 1], [], []>} : vector<128x128xbf16>, vector<128x128xbf16>, vector<128x128xf32> -> vector<128x128xf32>
    %3 = arith.truncf %2 : vector<128x128xf32> to vector<128x128xbf16>
    %c0_3 = arith.constant 0 : index
    %c0_4 = arith.constant 0 : index
    %c0_5 = arith.constant 0 : index
    %4 = vector.load %arg2[%c0_3, %c0_4, %c0_5] : memref<2x128x128xbf16, #tpu.memory_space<vmem>>, vector<1x128x128xbf16>
    %5 = vector.shape_cast %4 : vector<1x128x128xbf16> to vector<128x128xbf16>
    %cst_6 = arith.constant dense<0.000000e+00> : vector<128x128xf32>
    %6 = tpu.matmul %3, %5, %cst_6 {dimension_numbers = #tpu.dot_dimension_numbers<[1], [0], [0], [1], [0, 0, 1, 1], [], []>} : vector<128x128xbf16>, vector<128x128xbf16>, vector<128x128xf32> -> vector<128x128xf32>
    %c0_7 = arith.constant 0 : index
    %c0_8 = arith.constant 0 : index
    %c0_9 = arith.constant 0 : index
    %7 = vector.load %arg3[%c0_7, %c0_8, %c0_9] : memref<2x1x128xf32, #tpu.memory_space<vmem>>, vector<1x1x128xf32>
    %8 = vector.shape_cast %7 : vector<1x1x128xf32> to vector<1x128xf32>
    %9 = vector.broadcast %8 : vector<1x128xf32> to vector<128x128xf32>
    %10 = arith.addf %6, %9 : vector<128x128xf32>
    %cst_10 = arith.constant 0.000000e+00 : f32
    %11 = vector.broadcast %cst_10 : f32 to vector<128x128xf32>
    %12 = arith.maximumf %10, %11 : vector<128x128xf32>
    %13 = arith.truncf %12 : vector<128x128xf32> to vector<128x128xbf16>
    %c0_11 = arith.constant 0 : index
    %c0_12 = arith.constant 0 : index
    %14 = vector.load %arg4[%c0_11, %c0_12] : memref<128x128xbf16, #tpu.memory_space<vmem>>, vector<128x128xbf16>
    tpu.vector_store %arg4[%c0_11, %c0_12], %13 {strides = array<i32>} : memref<128x128xbf16, #tpu.memory_space<vmem>>, vector<128x128xbf16>,
    %cst_13 = arith.constant dense<0.000000e+00> : vector<128x128xf32>
    %15 = tpu.matmul %0, %13, %cst_13 {dimension_numbers = #tpu.dot_dimension_numbers<[1], [0], [0], [1], [0, 0, 1, 1], [], []>} : vector<128x128xbf16>, vector<128x128xbf16>, vector<128x128xf32> -> vector<128x128xf32>
    %16 = arith.truncf %15 : vector<128x128xf32> to vector<128x128xbf16>
    %c1 = arith.constant 1 : index
    %c0_14 = arith.constant 0 : index
    %c0_15 = arith.constant 0 : index
    %17 = vector.load %arg2[%c1, %c0_14, %c0_15] : memref<2x128x128xbf16, #tpu.memory_space<vmem>>, vector<1x128x128xbf16>
    %18 = vector.shape_cast %17 : vector<1x128x128xbf16> to vector<128x128xbf16>
    %cst_16 = arith.constant dense<0.000000e+00> : vector<128x128xf32>
    %19 = tpu.matmul %16, %18, %cst_16 {dimension_numbers = #tpu.dot_dimension_numbers<[1], [0], [0], [1], [0, 0, 1, 1], [], []>} : vector<128x128xbf16>, vector<128x128xbf16>, vector<128x128xf32> -> vector<128x128xf32>
    %c1_17 = arith.constant 1 : index
    %c0_18 = arith.constant 0 : index
    %c0_19 = arith.constant 0 : index
    %20 = vector.load %arg3[%c1_17, %c0_18, %c0_19] : memref<2x1x128xf32, #tpu.memory_space<vmem>>, vector<1x1x128xf32>
    %21 = vector.shape_cast %20 : vector<1x1x128xf32> to vector<1x128xf32>
    %22 = vector.broadcast %21 : vector<1x128xf32> to vector<128x128xf32>
    %23 = arith.addf %19, %22 : vector<128x128xf32>
    %cst_20 = arith.constant 0.000000e+00 : f32
    %24 = vector.broadcast %cst_20 : f32 to vector<128x128xf32>
    %25 = arith.maximumf %23, %24 : vector<128x128xf32>
    %26 = arith.truncf %25 : vector<128x128xf32> to vector<128x128xbf16>
    %c0_21 = arith.constant 0 : index
    %c0_22 = arith.constant 0 : index
    %27 = vector.load %arg5[%c0_21, %c0_22] : memref<128x128xbf16, #tpu.memory_space<vmem>>, vector<128x128xbf16>
    tpu.vector_store %arg5[%c0_21, %c0_22], %26 {strides = array<i32>} : memref<128x128xbf16, #tpu.memory_space<vmem>>, vector<128x128xbf16>,
    return
  }
}

</mosaic_0001>

<llo_original>
// kernel: tpu_custom_call.1
$region0: #{tpu_custom_call.1}
  #allocation0 [shape = 'u32[]', space=smem, size = 0x4, offset = 0x4, fixed_abs, tag = 'smem constant byte address 0x4 - core index']
  #allocation1 [shape = 'u32[72,128]{1,0:T(1,128)}', space=vmem, size = 0x9000, scoped, tag = 'internal scratch']
  %s0 = inlined_call_operand.hbm [shape: bf16[128,128], index: 0, kind: input, shape index: {}]
  %s1 = inlined_call_operand.hbm [shape: bf16[128,128], index: 1, kind: input, shape index: {}]
  %s2 = inlined_call_operand.hbm [shape: bf16[2,128,128], index: 2, kind: input, shape index: {}]
  %s3 = inlined_call_operand.vmem [shape: f32[2,1,128], index: 3, kind: input, shape index: {}]
  %s4 = inlined_call_operand.hbm [shape: bf16[128,128], index: 4, kind: output, shape index: {0}]
  %s5 = inlined_call_operand.hbm [shape: bf16[128,128], index: 5, kind: output, shape index: {1}]
  %6 = xla_tuple %s4, %s5
  %s7 = sld [smem:[#allocation0]]
  $region46: #{tpu_custom_call.1} parent=0
    _
  %s9 = ssub.s32 1, %s7
  %s10 = scalar_select 0, %s9, %s7
  $region1: #{tpu_custom_call.1} parent=0
    #allocation2 [shape = 'u8[32768]{0}', space=vmem, size = 0x8000, scoped, tag = 'input window, operand 0, single buffered']
    #allocation3 [shape = 's32[1]{0}', space=sflag, size = 0x4, scoped, tag = 'scoped memory for tpu_custom_call.1']
    #allocation4 [shape = 's32[1]{0}', space=sflag, size = 0x4, scoped, tag = 'scoped memory for tpu_custom_call.1']
    #allocation5 [shape = 'u8[32768]{0}', space=vmem, size = 0x8000, scoped, tag = 'input window, operand 1, single buffered']
    #allocation6 [shape = 's32[1]{0}', space=sflag, size = 0x4, scoped, tag = 'scoped memory for tpu_custom_call.1']
    #allocation7 [shape = 'u8[65536]{0}', space=vmem, size = 0x10000, scoped, tag = 'input window, operand 2, single buffered']
    #allocation8 [shape = 'u8[32768]{0}', space=vmem, size = 0x8000, scoped, tag = 'output window, operand 0, single buffered']
    #allocation9 [shape = 'u8[32768]{0}', space=vmem, size = 0x8000, scoped, tag = 'output window, operand 1, single buffered']
    #allocation10 [shape = 's32[1]{0}', space=sflag, size = 0x4, scoped, tag = 'scoped memory for tpu_custom_call.1']
    %11 = vsyncpa [#allocation3], 0
    %12 = vsyncpa [#allocation6], 0
    %13 = vsyncpa [#allocation4], 0
    %14 = vsyncpa [#allocation10], 0
    // Predicated region
    $region2: #{tpu_custom_call.1} parent=1 // pred_check
      _
    $region3: #{tpu_custom_call.1} parent=1 // pred_check_branch
      %16 = sbr.rel (0) target = $region5
    $region4: #{tpu_custom_call.1} parent=1 // pred_region
      %18 = vsyncadd [#allocation3], 0
      %s19 = sshll.u32 %s0, 4
      %s20 = int_to_ptr.hbm [resolvable:$true] %s19
      %s21 = sshll.u32 [#allocation2], 4
      %s22 = int_to_ptr.vmem [resolvable:$true] %s21
      %27 = dma.hbm_to_vmem [thread:$0]  %s20, 1024, %s22, [#allocation3], 64, 64, 4
    $region5: #{tpu_custom_call.1} parent=1 // pred_fallthru
      _
    // Predicated region
    $region6: #{tpu_custom_call.1} parent=1 // pred_check
      _
    $region7: #{tpu_custom_call.1} parent=1 // pred_check_branch
      %29 = sbr.rel (0) target = $region9
    $region8: #{tpu_custom_call.1} parent=1 // pred_region
      %31 = vsyncadd [#allocation6], 0
      %s32 = sshll.u32 %s1, 4
      %s33 = int_to_ptr.hbm [resolvable:$true] %s32
      %s34 = sshll.u32 [#allocation5], 4
      %s35 = int_to_ptr.vmem [resolvable:$true] %s34
      %40 = dma.hbm_to_vmem [thread:$0]  %s33, 1024, %s35, [#allocation6], 64, 64, 4
    $region9: #{tpu_custom_call.1} parent=1 // pred_fallthru
      _
    // Predicated region
    $region10: #{tpu_custom_call.1} parent=1 // pred_check
      _
    $region11: #{tpu_custom_call.1} parent=1 // pred_check_branch
      %42 = sbr.rel (0) target = $region13
    $region12: #{tpu_custom_call.1} parent=1 // pred_region
      %44 = vsyncadd [#allocation6], 0
      %s45 = sshll.u32 %s2, 4
      %s46 = int_to_ptr.hbm [resolvable:$true] %s45
      %s47 = sshll.u32 [#allocation7], 4
      %s48 = int_to_ptr.vmem [resolvable:$true] %s47
      %53 = dma.hbm_to_vmem [thread:$0]  %s46, 2048, %s48, [#allocation6], 64, 64, 4
    $region13: #{tpu_custom_call.1} parent=1 // pred_fallthru
      _
    // Predicated region
    $region14: #{tpu_custom_call.1} parent=1 // pred_check
      _
    $region15: #{tpu_custom_call.1} parent=1 // pred_check_branch
      %55 = sbr.rel (0) target = $region17
    $region16: #{tpu_custom_call.1} parent=1 // pred_region
      _
    $region17: #{tpu_custom_call.1} parent=1 // pred_fallthru
      _
    // Predicated region
    $region18: #{tpu_custom_call.1} parent=1 // pred_check
      _
    $region19: #{tpu_custom_call.1} parent=1 // pred_check_branch
      %57 = sbr.rel (0) target = $region21
    $region20: #{tpu_custom_call.1} parent=1 // pred_region
      %59 = dma.done [#allocation3], 1024
    $region21: #{tpu_custom_call.1} parent=1 // pred_fallthru
      _
    // Predicated region
    $region22: #{tpu_custom_call.1} parent=1 // pred_check
      _
    $region23: #{tpu_custom_call.1} parent=1 // pred_check_branch
      %61 = sbr.rel (0) target = $region25
    $region24: #{tpu_custom_call.1} parent=1 // pred_region
      %63 = dma.done [#allocation6], 1024
    $region25: #{tpu_custom_call.1} parent=1 // pred_fallthru
      _
    // Predicated region
    $region26: #{tpu_custom_call.1} parent=1 // pred_check
      _
    $region27: #{tpu_custom_call.1} parent=1 // pred_check_branch
      %65 = sbr.rel (0) target = $region29
    $region28: #{tpu_custom_call.1} parent=1 // pred_region
      %67 = dma.done [#allocation6], 2048
    $region29: #{tpu_custom_call.1} parent=1 // pred_fallthru
      _
    %v68 = vld [vmem:[#allocation2] sm:$0xf]
    %v69 = vld [vmem:[#allocation2 + $0x4] sm:$0xf]
    %v70 = vld [vmem:[#allocation2 + $0x8] sm:$0xf]
    %v71 = vld [vmem:[#allocation2 + $0xc] sm:$0xf]
    %v72 = vld [vmem:[#allocation2 + $0x10] sm:$0xf]
    %v73 = vld [vmem:[#allocation2 + $0x14] sm:$0xf]
    %v74 = vld [vmem:[#allocation2 + $0x18] sm:$0xf]
    %v75 = vld [vmem:[#allocation2 + $0x1c] sm:$0xf]
    %v76 = vld [vmem:[#allocation2 + $0x20] sm:$0xf]
    %v77 = vld [vmem:[#allocation2 + $0x24] sm:$0xf]
    %v78 = vld [vmem:[#allocation2 + $0x28] sm:$0xf]
    %v79 = vld [vmem:[#allocation2 + $0x2c] sm:$0xf]
    %v80 = vld [vmem:[#allocation2 + $0x30] sm:$0xf]
    %v81 = vld [vmem:[#allocation2 + $0x34] sm:$0xf]
    %v82 = vld [vmem:[#allocation2 + $0x38] sm:$0xf]
    %v83 = vld [vmem:[#allocation2 + $0x3c] sm:$0xf]
    %v84 = vld [vmem:[#allocation5] sm:$0xf]
    %v85 = vld [vmem:[#allocation5 + $0x4] sm:$0xf]
    %v86 = vld [vmem:[#allocation5 + $0x8] sm:$0xf]
    %v87 = vld [vmem:[#allocation5 + $0xc] sm:$0xf]
    %v88 = vld [vmem:[#allocation5 + $0x10] sm:$0xf]
    %v89 = vld [vmem:[#allocation5 + $0x14] sm:$0xf]
    %v90 = vld [vmem:[#allocation5 + $0x18] sm:$0xf]
    %v91 = vld [vmem:[#allocation5 + $0x1c] sm:$0xf]
    %v92 = vld [vmem:[#allocation5 + $0x20] sm:$0xf]
    %v93 = vld [vmem:[#allocation5 + $0x24] sm:$0xf]
    %v94 = vld [vmem:[#allocation5 + $0x28] sm:$0xf]
    %v95 = vld [vmem:[#allocation5 + $0x2c] sm:$0xf]
    %v96 = vld [vmem:[#allocation5 + $0x30] sm:$0xf]
    %v97 = vld [vmem:[#allocation5 + $0x34] sm:$0xf]
    %v98 = vld [vmem:[#allocation5 + $0x38] sm:$0xf]
    %v99 = vld [vmem:[#allocation5 + $0x3c] sm:$0xf]
    %v116 = vunpack.c.l.b16 %v68
    %v117 = vunpack.c.l.b16 %v69
    %v118 = vunpack.c.l.b16 %v70
    %v119 = vunpack.c.l.b16 %v71
    %v120 = vunpack.c.l.b16 %v72
    %v121 = vunpack.c.l.b16 %v73
    %v122 = vunpack.c.l.b16 %v74
    %v123 = vunpack.c.l.b16 %v75
    %v124 = vunpack.c.l.b16 %v76
    %v125 = vunpack.c.l.b16 %v77
    %v126 = vunpack.c.l.b16 %v78
    %v127 = vunpack.c.l.b16 %v79
    %v128 = vunpack.c.l.b16 %v80
    %v129 = vunpack.c.l.b16 %v81
    %v130 = vunpack.c.l.b16 %v82
    %v131 = vunpack.c.l.b16 %v83
    %v132 = vpack.c.b16 %v117, %v116
    %v133 = vpack.c.b16 %v119, %v118
    %v134 = vpack.c.b16 %v121, %v120
    %v135 = vpack.c.b16 %v123, %v122
    %v136 = vpack.c.b16 %v125, %v124
    %v137 = vpack.c.b16 %v127, %v126
    %v138 = vpack.c.b16 %v129, %v128
    %v139 = vpack.c.b16 %v131, %v130
    %v164 = vunpack.c.l.b16 %v84
    %v165 = vunpack.c.l.b16 %v85
    %v166 = vunpack.c.l.b16 %v86
    %v167 = vunpack.c.l.b16 %v87
    %v168 = vunpack.c.l.b16 %v88
    %v169 = vunpack.c.l.b16 %v89
    %v170 = vunpack.c.l.b16 %v90
    %v171 = vunpack.c.l.b16 %v91
    %v172 = vunpack.c.l.b16 %v92
    %v173 = vunpack.c.l.b16 %v93
    %v174 = vunpack.c.l.b16 %v94
    %v175 = vunpack.c.l.b16 %v95
    %v176 = vunpack.c.l.b16 %v96
    %v177 = vunpack.c.l.b16 %v97
    %v178 = vunpack.c.l.b16 %v98
    %v179 = vunpack.c.l.b16 %v99
    %v180 = vpack.c.b16 %v165, %v164
    %v181 = vpack.c.b16 %v167, %v166
    %v182 = vpack.c.b16 %v169, %v168
    %v183 = vpack.c.b16 %v171, %v170
    %v184 = vpack.c.b16 %v173, %v172
    %v185 = vpack.c.b16 %v175, %v174
    %v186 = vpack.c.b16 %v177, %v176
    %v187 = vpack.c.b16 %v179, %v178
    %196 = vmatpush.bf16.msra.mxu0 %v187
    %197 = vmatpush.bf16.msra.mxu0 %v186
    %198 = vmatpush.bf16.msra.mxu0 %v185
    %199 = vmatpush.bf16.msra.mxu0 %v184
    %200 = vmatpush.bf16.msra.mxu0 %v183
    %201 = vmatpush.bf16.msra.mxu0 %v182
    %202 = vmatpush.bf16.msra.mxu0 %v181
    %203 = vmatpush.bf16.msra.mxu0 %v180
    %204 = vmatmul.bf16.gmra.mxu0 %v132
    %v205 = vpop.f32.mrf.mxu0
    %v206 = vadd.f32 0.0, %v205
    %v207 = vpop.f32.mrf.mxu0
    %v208 = vadd.f32 0.0, %v207
    %209 = vmatmul.bf16.gmra.mxu0 %v133
    %v210 = vpop.f32.mrf.mxu0
    %v211 = vadd.f32 0.0, %v210
    %v212 = vpop.f32.mrf.mxu0
    %v213 = vadd.f32 0.0, %v212
    %214 = vmatmul.bf16.gmra.mxu0 %v134
    %v215 = vpop.f32.mrf.mxu0
    %v216 = vadd.f32 0.0, %v215
    %v217 = vpop.f32.mrf.mxu0
    %v218 = vadd.f32 0.0, %v217
    %219 = vmatmul.bf16.gmra.mxu0 %v135
    %v220 = vpop.f32.mrf.mxu0
    %v221 = vadd.f32 0.0, %v220
    %v222 = vpop.f32.mrf.mxu0
    %v223 = vadd.f32 0.0, %v222
    %224 = vmatmul.bf16.gmra.mxu0 %v136
    %v225 = vpop.f32.mrf.mxu0
    %v226 = vadd.f32 0.0, %v225
    %v227 = vpop.f32.mrf.mxu0
    %v228 = vadd.f32 0.0, %v227
    %229 = vmatmul.bf16.gmra.mxu0 %v137
    %v230 = vpop.f32.mrf.mxu0
    %v231 = vadd.f32 0.0, %v230
    %v232 = vpop.f32.mrf.mxu0
    %v233 = vadd.f32 0.0, %v232
    %234 = vmatmul.bf16.gmra.mxu0 %v138
    %v235 = vpop.f32.mrf.mxu0
    %v236 = vadd.f32 0.0, %v235
    %v237 = vpop.f32.mrf.mxu0
    %v238 = vadd.f32 0.0, %v237
    %239 = vmatmul.bf16.gmra.mxu0 %v139
    %v240 = vpop.f32.mrf.mxu0
    %v241 = vadd.f32 0.0, %v240
    %v242 = vpop.f32.mrf.mxu0
    %v243 = vadd.f32 0.0, %v242
    %244 = vdwg.mxu0
    %v245 = vpack.c.bf16 %v208, %v206
    %v246 = vpack.c.bf16 %v213, %v211
    %v247 = vpack.c.bf16 %v218, %v216
    %v248 = vpack.c.bf16 %v223, %v221
    %v249 = vpack.c.bf16 %v228, %v226
    %v250 = vpack.c.bf16 %v233, %v231
    %v251 = vpack.c.bf16 %v238, %v236
    %v252 = vpack.c.bf16 %v243, %v241
    %v253 = vld [vmem:[#allocation7] sm:$0xf]
    %v254 = vld [vmem:[#allocation7 + $0x4] sm:$0xf]
    %v255 = vld [vmem:[#allocation7 + $0x8] sm:$0xf]
    %v256 = vld [vmem:[#allocation7 + $0xc] sm:$0xf]
    %v257 = vld [vmem:[#allocation7 + $0x10] sm:$0xf]
    %v258 = vld [vmem:[#allocation7 + $0x14] sm:$0xf]
    %v259 = vld [vmem:[#allocation7 + $0x18] sm:$0xf]
    %v260 = vld [vmem:[#allocation7 + $0x1c] sm:$0xf]
    %v261 = vld [vmem:[#allocation7 + $0x20] sm:$0xf]
    %v262 = vld [vmem:[#allocation7 + $0x24] sm:$0xf]
    %v263 = vld [vmem:[#allocation7 + $0x28] sm:$0xf]
    %v264 = vld [vmem:[#allocation7 + $0x2c] sm:$0xf]
    %v265 = vld [vmem:[#allocation7 + $0x30] sm:$0xf]
    %v266 = vld [vmem:[#allocation7 + $0x34] sm:$0xf]
    %v267 = vld [vmem:[#allocation7 + $0x38] sm:$0xf]
    %v268 = vld [vmem:[#allocation7 + $0x3c] sm:$0xf]
    %v269 = vld [vmem:[%s3] sm:$0x1]
    %v271 = vperm.slane %v269, 0
    %v289 = vunpack.c.l.b16 %v253
    %v290 = vunpack.c.l.b16 %v254
    %v291 = vunpack.c.l.b16 %v255
    %v292 = vunpack.c.l.b16 %v256
    %v293 = vunpack.c.l.b16 %v257
    %v294 = vunpack.c.l.b16 %v258
    %v295 = vunpack.c.l.b16 %v259
    %v296 = vunpack.c.l.b16 %v260
    %v297 = vunpack.c.l.b16 %v261
    %v298 = vunpack.c.l.b16 %v262
    %v299 = vunpack.c.l.b16 %v263
    %v300 = vunpack.c.l.b16 %v264
    %v301 = vunpack.c.l.b16 %v265
    %v302 = vunpack.c.l.b16 %v266
    %v303 = vunpack.c.l.b16 %v267
    %v304 = vunpack.c.l.b16 %v268
    %v305 = vpack.c.b16 %v290, %v289
    %v306 = vpack.c.b16 %v292, %v291
    %v307 = vpack.c.b16 %v294, %v293
    %v308 = vpack.c.b16 %v296, %v295
    %v309 = vpack.c.b16 %v298, %v297
    %v310 = vpack.c.b16 %v300, %v299
    %v311 = vpack.c.b16 %v302, %v301
    %v312 = vpack.c.b16 %v304, %v303
    %321 = vmatpush.bf16.msra.mxu0 %v312
    %322 = vmatpush.bf16.msra.mxu0 %v311
    %323 = vmatpush.bf16.msra.mxu0 %v310
    %324 = vmatpush.bf16.msra.mxu0 %v309
    %325 = vmatpush.bf16.msra.mxu0 %v308
    %326 = vmatpush.bf16.msra.mxu0 %v307
    %327 = vmatpush.bf16.msra.mxu0 %v306
    %328 = vmatpush.bf16.msra.mxu0 %v305
    %329 = vmatmul.bf16.gmra.mxu0 %v245
    %v330 = vpop.f32.mrf.mxu0
    %v331 = vadd.f32 %v271, %v330
    %v332 = vpop.f32.mrf.mxu0
    %v333 = vadd.f32 %v271, %v332
    %334 = vmatmul.bf16.gmra.mxu0 %v246
    %v335 = vpop.f32.mrf.mxu0
    %v336 = vadd.f32 %v271, %v335
    %v337 = vpop.f32.mrf.mxu0
    %v338 = vadd.f32 %v271, %v337
    %339 = vmatmul.bf16.gmra.mxu0 %v247
    %v340 = vpop.f32.mrf.mxu0
    %v341 = vadd.f32 %v271, %v340
    %v342 = vpop.f32.mrf.mxu0
    %v343 = vadd.f32 %v271, %v342
    %344 = vmatmul.bf16.gmra.mxu0 %v248
    %v345 = vpop.f32.mrf.mxu0
    %v346 = vadd.f32 %v271, %v345
    %v347 = vpop.f32.mrf.mxu0
    %v348 = vadd.f32 %v271, %v347
    %349 = vmatmul.bf16.gmra.mxu0 %v249
    %v350 = vpop.f32.mrf.mxu0
    %v351 = vadd.f32 %v271, %v350
    %v352 = vpop.f32.mrf.mxu0
    %v353 = vadd.f32 %v271, %v352
    %354 = vmatmul.bf16.gmra.mxu0 %v250
    %v355 = vpop.f32.mrf.mxu0
    %v356 = vadd.f32 %v271, %v355
    %v357 = vpop.f32.mrf.mxu0
    %v358 = vadd.f32 %v271, %v357
    %359 = vmatmul.bf16.gmra.mxu0 %v251
    %v360 = vpop.f32.mrf.mxu0
    %v361 = vadd.f32 %v271, %v360
    %v362 = vpop.f32.mrf.mxu0
    %v363 = vadd.f32 %v271, %v362
    %364 = vmatmul.bf16.gmra.mxu0 %v252
    %v365 = vpop.f32.mrf.mxu0
    %v366 = vadd.f32 %v271, %v365
    %v367 = vpop.f32.mrf.mxu0
    %v368 = vadd.f32 %v271, %v367
    %369 = vdwg.mxu0
    %v370 = vmax.f32 %v331, 0.0
    %v371 = vmax.f32 %v333, 0.0
    %v372 = vmax.f32 %v336, 0.0
    %v373 = vmax.f32 %v338, 0.0
    %v374 = vmax.f32 %v341, 0.0
    %v375 = vmax.f32 %v343, 0.0
    %v376 = vmax.f32 %v346, 0.0
    %v377 = vmax.f32 %v348, 0.0
    %v378 = vmax.f32 %v351, 0.0
    %v379 = vmax.f32 %v353, 0.0
    %v380 = vmax.f32 %v356, 0.0
    %v381 = vmax.f32 %v358, 0.0
    %v382 = vmax.f32 %v361, 0.0
    %v383 = vmax.f32 %v363, 0.0
    %v384 = vmax.f32 %v366, 0.0
    %v385 = vmax.f32 %v368, 0.0
    %v386 = vpack.c.bf16 %v370, %v370
    %v387 = vpack.c.bf16 %v371, %v371
    %v388 = vpack.c.bf16 %v372, %v372
    %v389 = vpack.c.bf16 %v373, %v373
    %v390 = vpack.c.bf16 %v374, %v374
    %v391 = vpack.c.bf16 %v375, %v375
    %v392 = vpack.c.bf16 %v376, %v376
    %v393 = vpack.c.bf16 %v377, %v377
    %v394 = vpack.c.bf16 %v378, %v378
    %v395 = vpack.c.bf16 %v379, %v379
    %v396 = vpack.c.bf16 %v380, %v380
    %v397 = vpack.c.bf16 %v381, %v381
    %v398 = vpack.c.bf16 %v382, %v382
    %v399 = vpack.c.bf16 %v383, %v383
    %v400 = vpack.c.bf16 %v384, %v384
    %v401 = vpack.c.bf16 %v385, %v385
    %402 = vst [vmem:[#allocation8] sm:$0xf] %v386
    %403 = vst [vmem:[#allocation8 + $0x4] sm:$0xf] %v387
    %404 = vst [vmem:[#allocation8 + $0x8] sm:$0xf] %v388
    %405 = vst [vmem:[#allocation8 + $0xc] sm:$0xf] %v389
    %406 = vst [vmem:[#allocation8 + $0x10] sm:$0xf] %v390
    %407 = vst [vmem:[#allocation8 + $0x14] sm:$0xf] %v391
    %408 = vst [vmem:[#allocation8 + $0x18] sm:$0xf] %v392
    %409 = vst [vmem:[#allocation8 + $0x1c] sm:$0xf] %v393
    %410 = vst [vmem:[#allocation8 + $0x20] sm:$0xf] %v394
    %411 = vst [vmem:[#allocation8 + $0x24] sm:$0xf] %v395
    %412 = vst [vmem:[#allocation8 + $0x28] sm:$0xf] %v396
    %413 = vst [vmem:[#allocation8 + $0x2c] sm:$0xf] %v397
    %414 = vst [vmem:[#allocation8 + $0x30] sm:$0xf] %v398
    %415 = vst [vmem:[#allocation8 + $0x34] sm:$0xf] %v399
    %416 = vst [vmem:[#allocation8 + $0x38] sm:$0xf] %v400
    %417 = vst [vmem:[#allocation8 + $0x3c] sm:$0xf] %v401
    %v434 = vunpack.c.l.b16 %v386
    %v435 = vunpack.c.l.b16 %v387
    %v436 = vunpack.c.l.b16 %v388
    %v437 = vunpack.c.l.b16 %v389
    %v438 = vunpack.c.l.b16 %v390
    %v439 = vunpack.c.l.b16 %v391
    %v440 = vunpack.c.l.b16 %v392
    %v441 = vunpack.c.l.b16 %v393
    %v442 = vunpack.c.l.b16 %v394
    %v443 = vunpack.c.l.b16 %v395
    %v444 = vunpack.c.l.b16 %v396
    %v445 = vunpack.c.l.b16 %v397
    %v446 = vunpack.c.l.b16 %v398
    %v447 = vunpack.c.l.b16 %v399
    %v448 = vunpack.c.l.b16 %v400
    %v449 = vunpack.c.l.b16 %v401
    %v450 = vpack.c.b16 %v435, %v434
    %v451 = vpack.c.b16 %v437, %v436
    %v452 = vpack.c.b16 %v439, %v438
    %v453 = vpack.c.b16 %v441, %v440
    %v454 = vpack.c.b16 %v443, %v442
    %v455 = vpack.c.b16 %v445, %v444
    %v456 = vpack.c.b16 %v447, %v446
    %v457 = vpack.c.b16 %v449, %v448
    %466 = vmatpush.bf16.msra.mxu0 %v457
    %467 = vmatpush.bf16.msra.mxu0 %v456
    %468 = vmatpush.bf16.msra.mxu0 %v455
    %469 = vmatpush.bf16.msra.mxu0 %v454
    %470 = vmatpush.bf16.msra.mxu0 %v453
    %471 = vmatpush.bf16.msra.mxu0 %v452
    %472 = vmatpush.bf16.msra.mxu0 %v451
    %473 = vmatpush.bf16.msra.mxu0 %v450
    %474 = vmatmul.bf16.gmra.mxu0 %v132
    %v475 = vpop.f32.mrf.mxu0
    %v476 = vadd.f32 0.0, %v475
    %v477 = vpop.f32.mrf.mxu0
    %v478 = vadd.f32 0.0, %v477
    %479 = vmatmul.bf16.gmra.mxu0 %v133
    %v480 = vpop.f32.mrf.mxu0
    %v481 = vadd.f32 0.0, %v480
    %v482 = vpop.f32.mrf.mxu0
    %v483 = vadd.f32 0.0, %v482
    %484 = vmatmul.bf16.gmra.mxu0 %v134
    %v485 = vpop.f32.mrf.mxu0
    %v486 = vadd.f32 0.0, %v485
    %v487 = vpop.f32.mrf.mxu0
    %v488 = vadd.f32 0.0, %v487
    %489 = vmatmul.bf16.gmra.mxu0 %v135
    %v490 = vpop.f32.mrf.mxu0
    %v491 = vadd.f32 0.0, %v490
    %v492 = vpop.f32.mrf.mxu0
    %v493 = vadd.f32 0.0, %v492
    %494 = vmatmul.bf16.gmra.mxu0 %v136
    %v495 = vpop.f32.mrf.mxu0
    %v496 = vadd.f32 0.0, %v495
    %v497 = vpop.f32.mrf.mxu0
    %v498 = vadd.f32 0.0, %v497
    %499 = vmatmul.bf16.gmra.mxu0 %v137
    %v500 = vpop.f32.mrf.mxu0
    %v501 = vadd.f32 0.0, %v500
    %v502 = vpop.f32.mrf.mxu0
    %v503 = vadd.f32 0.0, %v502
    %504 = vmatmul.bf16.gmra.mxu0 %v138
    %v505 = vpop.f32.mrf.mxu0
    %v506 = vadd.f32 0.0, %v505
    %v507 = vpop.f32.mrf.mxu0
    %v508 = vadd.f32 0.0, %v507
    %509 = vmatmul.bf16.gmra.mxu0 %v139
    %v510 = vpop.f32.mrf.mxu0
    %v511 = vadd.f32 0.0, %v510
    %v512 = vpop.f32.mrf.mxu0
    %v513 = vadd.f32 0.0, %v512
    %514 = vdwg.mxu0
    %v515 = vpack.c.bf16 %v478, %v476
    %v516 = vpack.c.bf16 %v483, %v481
    %v517 = vpack.c.bf16 %v488, %v486
    %v518 = vpack.c.bf16 %v493, %v491
    %v519 = vpack.c.bf16 %v498, %v496
    %v520 = vpack.c.bf16 %v503, %v501
    %v521 = vpack.c.bf16 %v508, %v506
    %v522 = vpack.c.bf16 %v513, %v511
    %s523 = scalar_lea.vmem [#allocation7], 64
    %v524 = vld [vmem:[%s523] sm:$0xf]
    %v525 = vld [vmem:[%s523 + $0x4] sm:$0xf]
    %v526 = vld [vmem:[%s523 + $0x8] sm:$0xf]
    %v527 = vld [vmem:[%s523 + $0xc] sm:$0xf]
    %v528 = vld [vmem:[%s523 + $0x10] sm:$0xf]
    %v529 = vld [vmem:[%s523 + $0x14] sm:$0xf]
    %v530 = vld [vmem:[%s523 + $0x18] sm:$0xf]
    %v531 = vld [vmem:[%s523 + $0x1c] sm:$0xf]
    %v532 = vld [vmem:[%s523 + $0x20] sm:$0xf]
    %v533 = vld [vmem:[%s523 + $0x24] sm:$0xf]
    %v534 = vld [vmem:[%s523 + $0x28] sm:$0xf]
    %v535 = vld [vmem:[%s523 + $0x2c] sm:$0xf]
    %v536 = vld [vmem:[%s523 + $0x30] sm:$0xf]
    %v537 = vld [vmem:[%s523 + $0x34] sm:$0xf]
    %v538 = vld [vmem:[%s523 + $0x38] sm:$0xf]
    %v539 = vld [vmem:[%s523 + $0x3c] sm:$0xf]
    %s540 = scalar_lea.vmem %s3, 1
    %v541 = vld [vmem:[%s540] sm:$0x1]
    %v543 = vperm.slane %v541, 0
    %v561 = vunpack.c.l.b16 %v524
    %v562 = vunpack.c.l.b16 %v525
    %v563 = vunpack.c.l.b16 %v526
    %v564 = vunpack.c.l.b16 %v527
    %v565 = vunpack.c.l.b16 %v528
    %v566 = vunpack.c.l.b16 %v529
    %v567 = vunpack.c.l.b16 %v530
    %v568 = vunpack.c.l.b16 %v531
    %v569 = vunpack.c.l.b16 %v532
    %v570 = vunpack.c.l.b16 %v533
    %v571 = vunpack.c.l.b16 %v534
    %v572 = vunpack.c.l.b16 %v535
    %v573 = vunpack.c.l.b16 %v536
    %v574 = vunpack.c.l.b16 %v537
    %v575 = vunpack.c.l.b16 %v538
    %v576 = vunpack.c.l.b16 %v539
    %v577 = vpack.c.b16 %v562, %v561
    %v578 = vpack.c.b16 %v564, %v563
    %v579 = vpack.c.b16 %v566, %v565
    %v580 = vpack.c.b16 %v568, %v567
    %v581 = vpack.c.b16 %v570, %v569
    %v582 = vpack.c.b16 %v572, %v571
    %v583 = vpack.c.b16 %v574, %v573
    %v584 = vpack.c.b16 %v576, %v575
    %593 = vmatpush.bf16.msra.mxu0 %v584
    %594 = vmatpush.bf16.msra.mxu0 %v583
    %595 = vmatpush.bf16.msra.mxu0 %v582
    %596 = vmatpush.bf16.msra.mxu0 %v581
    %597 = vmatpush.bf16.msra.mxu0 %v580
    %598 = vmatpush.bf16.msra.mxu0 %v579
    %599 = vmatpush.bf16.msra.mxu0 %v578
    %600 = vmatpush.bf16.msra.mxu0 %v577
    %601 = vmatmul.bf16.gmra.mxu0 %v515
    %v602 = vpop.f32.mrf.mxu0
    %v603 = vadd.f32 %v543, %v602
    %v604 = vpop.f32.mrf.mxu0
    %v605 = vadd.f32 %v543, %v604
    %606 = vmatmul.bf16.gmra.mxu0 %v516
    %v607 = vpop.f32.mrf.mxu0
    %v608 = vadd.f32 %v543, %v607
    %v609 = vpop.f32.mrf.mxu0
    %v610 = vadd.f32 %v543, %v609
    %611 = vmatmul.bf16.gmra.mxu0 %v517
    %v612 = vpop.f32.mrf.mxu0
    %v613 = vadd.f32 %v543, %v612
    %v614 = vpop.f32.mrf.mxu0
    %v615 = vadd.f32 %v543, %v614
    %616 = vmatmul.bf16.gmra.mxu0 %v518
    %v617 = vpop.f32.mrf.mxu0
    %v618 = vadd.f32 %v543, %v617
    %v619 = vpop.f32.mrf.mxu0
    %v620 = vadd.f32 %v543, %v619
    %621 = vmatmul.bf16.gmra.mxu0 %v519
    %v622 = vpop.f32.mrf.mxu0
    %v623 = vadd.f32 %v543, %v622
    %v624 = vpop.f32.mrf.mxu0
    %v625 = vadd.f32 %v543, %v624
    %626 = vmatmul.bf16.gmra.mxu0 %v520
    %v627 = vpop.f32.mrf.mxu0
    %v628 = vadd.f32 %v543, %v627
    %v629 = vpop.f32.mrf.mxu0
    %v630 = vadd.f32 %v543, %v629
    %631 = vmatmul.bf16.gmra.mxu0 %v521
    %v632 = vpop.f32.mrf.mxu0
    %v633 = vadd.f32 %v543, %v632
    %v634 = vpop.f32.mrf.mxu0
    %v635 = vadd.f32 %v543, %v634
    %636 = vmatmul.bf16.gmra.mxu0 %v522
    %v637 = vpop.f32.mrf.mxu0
    %v638 = vadd.f32 %v543, %v637
    %v639 = vpop.f32.mrf.mxu0
    %v640 = vadd.f32 %v543, %v639
    %641 = vdwg.mxu0
    %v642 = vmax.f32 %v603, 0.0
    %v643 = vmax.f32 %v605, 0.0
    %v644 = vmax.f32 %v608, 0.0
    %v645 = vmax.f32 %v610, 0.0
    %v646 = vmax.f32 %v613, 0.0
    %v647 = vmax.f32 %v615, 0.0
    %v648 = vmax.f32 %v618, 0.0
    %v649 = vmax.f32 %v620, 0.0
    %v650 = vmax.f32 %v623, 0.0
    %v651 = vmax.f32 %v625, 0.0
    %v652 = vmax.f32 %v628, 0.0
    %v653 = vmax.f32 %v630, 0.0
    %v654 = vmax.f32 %v633, 0.0
    %v655 = vmax.f32 %v635, 0.0
    %v656 = vmax.f32 %v638, 0.0
    %v657 = vmax.f32 %v640, 0.0
    %v658 = vpack.c.bf16 %v642, %v642
    %v659 = vpack.c.bf16 %v643, %v643
    %v660 = vpack.c.bf16 %v644, %v644
    %v661 = vpack.c.bf16 %v645, %v645
    %v662 = vpack.c.bf16 %v646, %v646
    %v663 = vpack.c.bf16 %v647, %v647
    %v664 = vpack.c.bf16 %v648, %v648
    %v665 = vpack.c.bf16 %v649, %v649
    %v666 = vpack.c.bf16 %v650, %v650
    %v667 = vpack.c.bf16 %v651, %v651
    %v668 = vpack.c.bf16 %v652, %v652
    %v669 = vpack.c.bf16 %v653, %v653
    %v670 = vpack.c.bf16 %v654, %v654
    %v671 = vpack.c.bf16 %v655, %v655
    %v672 = vpack.c.bf16 %v656, %v656
    %v673 = vpack.c.bf16 %v657, %v657
    %674 = vst [vmem:[#allocation9] sm:$0xf] %v658
    %675 = vst [vmem:[#allocation9 + $0x4] sm:$0xf] %v659
    %676 = vst [vmem:[#allocation9 + $0x8] sm:$0xf] %v660
    %677 = vst [vmem:[#allocation9 + $0xc] sm:$0xf] %v661
    %678 = vst [vmem:[#allocation9 + $0x10] sm:$0xf] %v662
    %679 = vst [vmem:[#allocation9 + $0x14] sm:$0xf] %v663
    %680 = vst [vmem:[#allocation9 + $0x18] sm:$0xf] %v664
    %681 = vst [vmem:[#allocation9 + $0x1c] sm:$0xf] %v665
    %682 = vst [vmem:[#allocation9 + $0x20] sm:$0xf] %v666
    %683 = vst [vmem:[#allocation9 + $0x24] sm:$0xf] %v667
    %684 = vst [vmem:[#allocation9 + $0x28] sm:$0xf] %v668
    %685 = vst [vmem:[#allocation9 + $0x2c] sm:$0xf] %v669
    %686 = vst [vmem:[#allocation9 + $0x30] sm:$0xf] %v670
    %687 = vst [vmem:[#allocation9 + $0x34] sm:$0xf] %v671
    %688 = vst [vmem:[#allocation9 + $0x38] sm:$0xf] %v672
    %689 = vst [vmem:[#allocation9 + $0x3c] sm:$0xf] %v673
    // Predicated region
    $region30: #{tpu_custom_call.1} parent=1 // pred_check
      _
    $region31: #{tpu_custom_call.1} parent=1 // pred_check_branch
      %691 = sbr.rel (0) target = $region33
    $region32: #{tpu_custom_call.1} parent=1 // pred_region
      %693 = vsyncadd [#allocation4], 0
      %s694 = sshll.u32 [#allocation8], 4
      %s695 = int_to_ptr.vmem [resolvable:$true] %s694
      %s696 = sshll.u32 %s4, 4
      %s697 = int_to_ptr.hbm [resolvable:$true] %s696
      %702 = dma.vmem_to_hbm [thread:$0]  %s695, 1024, %s697, [#allocation4], 64, 64, 4
    $region33: #{tpu_custom_call.1} parent=1 // pred_fallthru
      _
    // Predicated region
    $region34: #{tpu_custom_call.1} parent=1 // pred_check
      _
    $region35: #{tpu_custom_call.1} parent=1 // pred_check_branch
      %704 = sbr.rel (0) target = $region37
    $region36: #{tpu_custom_call.1} parent=1 // pred_region
      %706 = vsyncadd [#allocation10], 0
      %s707 = sshll.u32 [#allocation9], 4
      %s708 = int_to_ptr.vmem [resolvable:$true] %s707
      %s709 = sshll.u32 %s5, 4
      %s710 = int_to_ptr.hbm [resolvable:$true] %s709
      %715 = dma.vmem_to_hbm [thread:$0]  %s708, 1024, %s710, [#allocation10], 64, 64, 4
    $region37: #{tpu_custom_call.1} parent=1 // pred_fallthru
      _
    // Predicated region
    $region38: #{tpu_custom_call.1} parent=1 // pred_check
      _
    $region39: #{tpu_custom_call.1} parent=1 // pred_check_branch
      %717 = sbr.rel (0) target = $region41
    $region40: #{tpu_custom_call.1} parent=1 // pred_region
      %719 = dma.done [#allocation4], 1024
    $region41: #{tpu_custom_call.1} parent=1 // pred_fallthru
      _
    // Predicated region
    $region42: #{tpu_custom_call.1} parent=1 // pred_check
      _
    $region43: #{tpu_custom_call.1} parent=1 // pred_check_branch
      %721 = sbr.rel (0) target = $region45
    $region44: #{tpu_custom_call.1} parent=1 // pred_region
      %723 = dma.done [#allocation10], 1024
    $region45: #{tpu_custom_call.1} parent=1 // pred_fallthru
      _
    %724 = vsyncpa [#allocation3], 1
    %725 = vsyncpa [#allocation6], 1
    %726 = vsyncpa [#allocation4], 1
    %727 = vsyncpa [#allocation10], 1

</llo_original>
